<compile_context>
chip_gen: v7x
topology: tpu7x:2x2x1
jax: 0.10.0
libtpu: 0.0.40
codegen_flags: <defaults>
</compile_context>

<pallas_src>
import functools

import jax
import jax.numpy as jnp
import numpy as np
from jax.experimental import pallas as pl
from jax.experimental.pallas import tpu as pltpu

TAU = 0.5        # Gumbel-softmax temperature
TOPK = 4         # number of selected features
NEG_BIG = -1e30  # "minus infinity" mask value (finite to avoid inf-inf NaNs)

# murmur3-finalizer constants, pre-wrapped to int32 range
_M1 = 0x85EBCA6B - (1 << 32)
_M2 = 0xC2B2AE35 - (1 << 32)
_GOLD = 0x9E3779B9 - (1 << 32)
_MANT_MASK = 0x007FFFFF          # 23 random mantissa bits

# approx reciprocal is a TPU EUP intrinsic; fall back to exact divide elsewhere
# (e.g. CPU interpret mode) so the kernel lowers on every backend.
_ON_TPU = jax.default_backend() == "tpu"


def _recip(x):
    return pl.reciprocal(x, approx=True) if _ON_TPU else 1.0 / x


# ---------------------------------------------------------------------------
# helpers
# ---------------------------------------------------------------------------
def _lsr(z, n):
    """Logical right shift for int32 (arithmetic shift + mask)."""
    return (z >> n) & ((1 << (32 - n)) - 1)


def _mix32(z):
    """murmur3 finalizer: int32 -> well-mixed int32 (wraparound arithmetic)."""
    z = (z ^ _lsr(z, 16)) * _M1
    z = (z ^ _lsr(z, 13)) * _M2
    return z ^ _lsr(z, 16)


def _batch_tile(b, n, elem_bytes=4):
    """Largest batch tile that (a) divides B (or equals it), (b) keeps the
    double-buffered in+out footprint under a VMEM budget that is safe on
    v5e/v6e and v7x's smaller VMEM, (c) leaves a >=2-step grid when B >= 16
    so the "parallel" axis can shard across both v7x TensorCores."""
    budget = 12 * 1024 * 1024          # stays under scoped-VMEM defaults everywhere
    per_row = 4 * n * elem_bytes       # 2 buffers x (in + out) per batch row
    cap = min(1024, max(8, budget // per_row))
    if b >= 16:
        cap = min(cap, b // 2)         # grid >= 2 -> both v7x cores busy
    if b % 8 != 0:
        return b                       # block == full batch dim (always legal)
    tb = 8
    for cand in range(8, min(cap, b) + 1, 8):
        if b % cand == 0:
            tb = cand
    return tb


# ---------------------------------------------------------------------------
# Pallas kernels
# ---------------------------------------------------------------------------
def _soft_topk_kernel(seed_ref, logits_ref, out_ref, *, k, tau, add_noise):
    """Relaxed top-k: running max over K in-kernel Gumbel-softmax samples."""
    x = logits_ref[...].astype(jnp.float32)             # (TB, N)
    tb, n = x.shape
    inv_tau = 1.0 / tau

    # Row max hoisted out of the K-sample loop: one XLU reduce per tile, not K.
    xm = jnp.max(x, axis=-1, keepdims=True)
    px = jnp.exp((x - xm) * inv_tau)                     # stable numerator, <= 1

    if not add_noise:
        s = jnp.sum(px, axis=-1, keepdims=True)
        out_ref[...] = (px / s).astype(out_ref.dtype)    # exact: used as reference path
        return

    # Counter-based on-chip PRNG: global (row, lane, sample) + seed -> uniform (0, 1).
    lane = jax.lax.broadcasted_iota(jnp.int32, (tb, n), 1)
    row = jax.lax.broadcasted_iota(jnp.int32, (tb, n), 0) + pl.program_id(0) * tb
    pos = row * n + lane                                  # tiling-independent element id
    seed_mix = _mix32(seed_ref[0] ^ _GOLD)                # decorrelates nearby seeds

    p = int(round(inv_tau))
    pow_rewrite = abs(inv_tau - p) < 1e-6 and 1 <= p <= 4

    acc = jnp.zeros_like(x)                               # max over the K softmaxes
    for j in range(k):                                    # K is tiny & static
        h = _mix32((pos * k + j) ^ seed_mix)
        mant = h & _MANT_MASK                             # 23 random bits
        u = (mant.astype(jnp.float32) + 0.5) * (1.0 / (1 << 23))   # uniform in (0, 1)
        nlu = -jnp.log(u)                                 # -log(u) in (~6e-8, ~16.7]
        if pow_rewrite:
            # exp((x - xm + g)/tau) = px * (-log u)^(-1/tau)  for integer 1/tau:
            # 1 EUP log + 1 EUP approx-reciprocal per sample (vs 2 logs + exp).
            nlup = nlu
            for _ in range(p - 1):
                nlup = nlup * nlu
            e = px * _recip(nlup)
        else:
            g = -jnp.log(nlu)                             # Gumbel(0, 1)
            e = jnp.exp((x - xm + g) * inv_tau - 17.0 * inv_tau)   # arg <= 0, safe
        s = jnp.sum(e, axis=-1, keepdims=True)
        acc = jnp.maximum(acc, e * _recip(s))

    out_ref[...] = acc.astype(out_ref.dtype)


def _hard_topk_kernel(logits_ref, out_ref, *, k):
    """Hard top-k mask via K passes of (row max -> lowest-index tie-break -> mask out)."""
    x = logits_ref[...].astype(jnp.float32)               # (TB, N)
    tb, n = x.shape
    lane = jax.lax.broadcasted_iota(jnp.int32, (tb, n), 1)

    work = x
    mask = jnp.zeros((tb, n), jnp.float32)
    for _ in range(k):                                     # K is tiny & static
        m = jnp.max(work, axis=-1, keepdims=True)          # row max (XLU reduce)
        cand = jnp.where(work >= m, lane, n)                # tie-break: lowest index
        sel = lane == jnp.min(cand, axis=-1, keepdims=True)
        mask = jnp.where(sel, 1.0, mask)
        work = jnp.where(sel, NEG_BIG, work)                # remove selected lane

    out_ref[...] = mask.astype(out_ref.dtype)


# ---------------------------------------------------------------------------
# wrappers
# ---------------------------------------------------------------------------
def soft_topk(logits, k=TOPK, tau=TAU, seed=0, add_noise=True):
    B, N = logits.shape
    assert 1 <= k <= N, "k must satisfy 1 <= k <= number of features"
    tb = _batch_tile(B, N)
    seed_arr = jnp.asarray([seed], dtype=jnp.int32)

    return pl.pallas_call(
        functools.partial(_soft_topk_kernel, k=k, tau=tau, add_noise=add_noise),
        out_shape=jax.ShapeDtypeStruct((B, N), logits.dtype),
        grid_spec=pltpu.PrefetchScalarGridSpec(
            num_scalar_prefetch=1,
            grid=(B // tb,),
            in_specs=[pl.BlockSpec((tb, N), lambda i, s_ref: (i, 0))],
            out_specs=pl.BlockSpec((tb, N), lambda i, s_ref: (i, 0)),
        ),
        compiler_params=pltpu.CompilerParams(dimension_semantics=("parallel",)),
    )(seed_arr, logits)


def hard_topk(logits, k=TOPK):
    B, N = logits.shape
    assert 1 <= k <= N, "k must satisfy 1 <= k <= number of features"
    tb = _batch_tile(B, N)

    return pl.pallas_call(
        functools.partial(_hard_topk_kernel, k=k),
        out_shape=jax.ShapeDtypeStruct((B, N), logits.dtype),
        grid=(B // tb,),
        in_specs=[pl.BlockSpec((tb, N), lambda i: (i, 0))],
        out_specs=pl.BlockSpec((tb, N), lambda i: (i, 0)),
        compiler_params=pltpu.CompilerParams(dimension_semantics=("parallel",)),
    )(logits)


# ---------------------------------------------------------------------------
# the module (no parameters — just the training/eval switch)
# ---------------------------------------------------------------------------
class DifferentiableSelectKModel:
    def __init__(self, diff_fun, fun):
        self.diff_fun = diff_fun
        self.fun = fun
        self.training = True

    def __call__(self, logits):
        return self.diff_fun(logits) if self.training else self.fun(logits)


if __name__ == "__main__":
    B, N = 8, 128          # batch, features (lane-aligned so I/O is fully lane-dense)
    SEED = 1234

    key = jax.random.PRNGKey(0)
    logits = jax.random.normal(key, (B, N), dtype=jnp.float32)

    model = DifferentiableSelectKModel(
        diff_fun=lambda lg: soft_topk(lg, k=TOPK, tau=TAU, seed=SEED),
        fun=lambda lg: hard_topk(lg, k=TOPK),
    )

    # training path (differentiable relaxation, in-kernel Gumbel noise)
    model.training = True
    soft_out = jax.block_until_ready(model(logits))

    # eval path (hard top-k mask)
    model.training = False
    hard_out = jax.block_until_ready(model(logits))

    # --- sanity checks ------------------------------------------------------
    # 1) noise-free soft path reduces to softmax(logits / tau)
    soft_nonoise = jax.block_until_ready(
        soft_topk(logits, k=TOPK, tau=TAU, seed=SEED, add_noise=False))
    np.testing.assert_allclose(
        np.asarray(soft_nonoise),
        np.asarray(jax.nn.softmax(logits / TAU, axis=-1)),
        rtol=1e-4, atol=1e-6)

    # 2) noisy soft path: deterministic for a fixed seed, structurally valid
    #    (tolerances loosened for the approx reciprocal on TPU)
    soft_out2 = jax.block_until_ready(
        soft_topk(logits, k=TOPK, tau=TAU, seed=SEED))
    assert np.array_equal(np.asarray(soft_out), np.asarray(soft_out2))
    s = np.asarray(soft_out)
    assert s.shape == (B, N)
    assert np.all(np.isfinite(s)) and np.all(s >= 0.0) and np.all(s <= 1.0 + 1e-3)
    row_sum = s.sum(-1)
    assert np.all(row_sum >= 1.0 - 1e-2) and np.all(row_sum <= TOPK + 1e-2)

    # 3) hard path: exactly K ones per row, matching jax.lax.top_k selection
    h = np.asarray(hard_out)
    assert h.shape == (B, N)
    assert np.all(np.isin(h, [0.0, 1.0]))
    assert np.all(h.sum(-1) == TOPK)
    _, ref_idx = jax.lax.top_k(logits, TOPK)
    ref_mask = np.zeros((B, N), np.float32)
    ref_mask[np.arange(B)[:, None], np.asarray(ref_idx)] = 1.0
    np.testing.assert_array_equal(h, ref_mask)

    print("KERNEL_OK")
</pallas_src>

<mosaic_0001>
module attributes {stable_mosaic.version = 11 : i64} {
  func.func @_soft_topk_kernel(%arg0: i32, %arg1: memref<1xi32, #tpu.memory_space<smem>>, %arg2: memref<8x128xf32, #tpu.memory_space<vmem>>, %arg3: memref<8x128xf32, #tpu.memory_space<vmem>>) attributes {dimension_semantics = [#tpu.dimension_semantics<parallel>], iteration_bounds = array<i64: 1>, scalar_prefetch = 1 : i64, scratch_operands = 0 : i64, tpu.core_type = #tpu.core_type<tc>, window_params = [{transform_indices = @transform_0, window_bounds = array<i64: 8, 128>}, {transform_indices = @transform_1, window_bounds = array<i64: 8, 128>}]} {
    %c0 = arith.constant 0 : index
    %c0_0 = arith.constant 0 : index
    %0 = vector.load %arg2[%c0, %c0_0] : memref<8x128xf32, #tpu.memory_space<vmem>>, vector<8x128xf32>
    %cst = arith.constant dense<0xFF800000> : vector<8xf32>
    %1 = vector.multi_reduction <maximumf>, %0, %cst [1] : vector<8x128xf32> to vector<8xf32>
    %2 = vector.shape_cast %1 : vector<8xf32> to vector<8x1xf32>
    %3 = vector.broadcast %2 : vector<8x1xf32> to vector<8x128xf32>
    %4 = arith.subf %0, %3 : vector<8x128xf32>
    %cst_1 = arith.constant 2.000000e+00 : f32
    %5 = vector.broadcast %cst_1 : f32 to vector<8x128xf32>
    %6 = arith.mulf %4, %5 : vector<8x128xf32>
    %7 = math.exp %6 : vector<8x128xf32>
    %8 = tpu.iota {dimensions = array<i32: 1>} : vector<8x128xi32>
    %9 = tpu.iota {dimensions = array<i32: 0>} : vector<8x128xi32>
    %c8_i32 = arith.constant 8 : i32
    %10 = arith.muli %arg0, %c8_i32 : i32
    %11 = vector.broadcast %10 : i32 to vector<8x128xi32>
    %12 = arith.addi %9, %11 : vector<8x128xi32>
    %c128_i32 = arith.constant 128 : i32
    %13 = vector.broadcast %c128_i32 : i32 to vector<8x128xi32>
    %14 = arith.muli %12, %13 : vector<8x128xi32>
    %15 = arith.addi %14, %8 : vector<8x128xi32>
    %c0_2 = arith.constant 0 : index
    %16 = memref.load %arg1[%c0_2] : memref<1xi32, #tpu.memory_space<smem>>
    %c-1640531527_i32 = arith.constant -1640531527 : i32
    %17 = arith.xori %16, %c-1640531527_i32 : i32
    %c16_i32 = arith.constant 16 : i32
    %18 = arith.shrsi %17, %c16_i32 : i32
    %c65535_i32 = arith.constant 65535 : i32
    %19 = arith.andi %18, %c65535_i32 : i32
    %20 = arith.xori %17, %19 : i32
    %c-2048144789_i32 = arith.constant -2048144789 : i32
    %21 = arith.muli %20, %c-2048144789_i32 : i32
    %c13_i32 = arith.constant 13 : i32
    %22 = arith.shrsi %21, %c13_i32 : i32
    %c524287_i32 = arith.constant 524287 : i32
    %23 = arith.andi %22, %c524287_i32 : i32
    %24 = arith.xori %21, %23 : i32
    %c-1028477387_i32 = arith.constant -1028477387 : i32
    %25 = arith.muli %24, %c-1028477387_i32 : i32
    %c16_i32_3 = arith.constant 16 : i32
    %26 = arith.shrsi %25, %c16_i32_3 : i32
    %c65535_i32_4 = arith.constant 65535 : i32
    %27 = arith.andi %26, %c65535_i32_4 : i32
    %28 = arith.xori %25, %27 : i32
    %cst_5 = arith.constant 0.000000e+00 : f32
    %29 = vector.broadcast %cst_5 : f32 to vector<8x128xf32>
    %c4_i32 = arith.constant 4 : i32
    %30 = vector.broadcast %c4_i32 : i32 to vector<8x128xi32>
    %31 = arith.muli %15, %30 : vector<8x128xi32>
    %c0_i32 = arith.constant 0 : i32
    %32 = vector.broadcast %c0_i32 : i32 to vector<8x128xi32>
    %33 = arith.addi %31, %32 : vector<8x128xi32>
    %34 = vector.broadcast %28 : i32 to vector<8x128xi32>
    %35 = arith.xori %33, %34 : vector<8x128xi32>
    %c16_i32_6 = arith.constant 16 : i32
    %36 = vector.broadcast %c16_i32_6 : i32 to vector<8x128xi32>
    %37 = arith.shrsi %35, %36 : vector<8x128xi32>
    %c65535_i32_7 = arith.constant 65535 : i32
    %38 = vector.broadcast %c65535_i32_7 : i32 to vector<8x128xi32>
    %39 = arith.andi %37, %38 : vector<8x128xi32>
    %40 = arith.xori %35, %39 : vector<8x128xi32>
    %c-2048144789_i32_8 = arith.constant -2048144789 : i32
    %41 = vector.broadcast %c-2048144789_i32_8 : i32 to vector<8x128xi32>
    %42 = arith.muli %40, %41 : vector<8x128xi32>
    %c13_i32_9 = arith.constant 13 : i32
    %43 = vector.broadcast %c13_i32_9 : i32 to vector<8x128xi32>
    %44 = arith.shrsi %42, %43 : vector<8x128xi32>
    %c524287_i32_10 = arith.constant 524287 : i32
    %45 = vector.broadcast %c524287_i32_10 : i32 to vector<8x128xi32>
    %46 = arith.andi %44, %45 : vector<8x128xi32>
    %47 = arith.xori %42, %46 : vector<8x128xi32>
    %c-1028477387_i32_11 = arith.constant -1028477387 : i32
    %48 = vector.broadcast %c-1028477387_i32_11 : i32 to vector<8x128xi32>
    %49 = arith.muli %47, %48 : vector<8x128xi32>
    %c16_i32_12 = arith.constant 16 : i32
    %50 = vector.broadcast %c16_i32_12 : i32 to vector<8x128xi32>
    %51 = arith.shrsi %49, %50 : vector<8x128xi32>
    %c65535_i32_13 = arith.constant 65535 : i32
    %52 = vector.broadcast %c65535_i32_13 : i32 to vector<8x128xi32>
    %53 = arith.andi %51, %52 : vector<8x128xi32>
    %54 = arith.xori %49, %53 : vector<8x128xi32>
    %c8388607_i32 = arith.constant 8388607 : i32
    %55 = vector.broadcast %c8388607_i32 : i32 to vector<8x128xi32>
    %56 = arith.andi %54, %55 : vector<8x128xi32>
    %57 = arith.sitofp %56 : vector<8x128xi32> to vector<8x128xf32>
    %cst_14 = arith.constant 5.000000e-01 : f32
    %58 = vector.broadcast %cst_14 : f32 to vector<8x128xf32>
    %59 = arith.addf %57, %58 : vector<8x128xf32>
    %cst_15 = arith.constant 1.1920929E-7 : f32
    %60 = vector.broadcast %cst_15 : f32 to vector<8x128xf32>
    %61 = arith.mulf %59, %60 : vector<8x128xf32>
    %62 = math.log %61 : vector<8x128xf32>
    %cst_16 = arith.constant 0.000000e+00 : f32
    %63 = vector.broadcast %cst_16 : f32 to vector<8x128xf32>
    %64 = arith.subf %63, %62 : vector<8x128xf32>
    %65 = arith.mulf %64, %64 : vector<8x128xf32>
    %cst_17 = arith.constant 1.000000e+00 : f32
    %66 = vector.broadcast %cst_17 : f32 to vector<8x128xf32>
    %67 = arith.divf %66, %65 : vector<8x128xf32>
    %68 = arith.mulf %7, %67 : vector<8x128xf32>
    %cst_18 = arith.constant dense<0.000000e+00> : vector<8xf32>
    %69 = vector.multi_reduction <add>, %68, %cst_18 [1] : vector<8x128xf32> to vector<8xf32>
    %70 = vector.shape_cast %69 : vector<8xf32> to vector<8x1xf32>
    %cst_19 = arith.constant 1.000000e+00 : f32
    %71 = vector.broadcast %cst_19 : f32 to vector<8x1xf32>
    %72 = arith.divf %71, %70 : vector<8x1xf32>
    %73 = vector.broadcast %72 : vector<8x1xf32> to vector<8x128xf32>
    %74 = arith.mulf %68, %73 : vector<8x128xf32>
    %75 = arith.maximumf %29, %74 : vector<8x128xf32>
    %c4_i32_20 = arith.constant 4 : i32
    %76 = vector.broadcast %c4_i32_20 : i32 to vector<8x128xi32>
    %77 = arith.muli %15, %76 : vector<8x128xi32>
    %c1_i32 = arith.constant 1 : i32
    %78 = vector.broadcast %c1_i32 : i32 to vector<8x128xi32>
    %79 = arith.addi %77, %78 : vector<8x128xi32>
    %80 = vector.broadcast %28 : i32 to vector<8x128xi32>
    %81 = arith.xori %79, %80 : vector<8x128xi32>
    %c16_i32_21 = arith.constant 16 : i32
    %82 = vector.broadcast %c16_i32_21 : i32 to vector<8x128xi32>
    %83 = arith.shrsi %81, %82 : vector<8x128xi32>
    %c65535_i32_22 = arith.constant 65535 : i32
    %84 = vector.broadcast %c65535_i32_22 : i32 to vector<8x128xi32>
    %85 = arith.andi %83, %84 : vector<8x128xi32>
    %86 = arith.xori %81, %85 : vector<8x128xi32>
    %c-2048144789_i32_23 = arith.constant -2048144789 : i32
    %87 = vector.broadcast %c-2048144789_i32_23 : i32 to vector<8x128xi32>
    %88 = arith.muli %86, %87 : vector<8x128xi32>
    %c13_i32_24 = arith.constant 13 : i32
    %89 = vector.broadcast %c13_i32_24 : i32 to vector<8x128xi32>
    %90 = arith.shrsi %88, %89 : vector<8x128xi32>
    %c524287_i32_25 = arith.constant 524287 : i32
    %91 = vector.broadcast %c524287_i32_25 : i32 to vector<8x128xi32>
    %92 = arith.andi %90, %91 : vector<8x128xi32>
    %93 = arith.xori %88, %92 : vector<8x128xi32>
    %c-1028477387_i32_26 = arith.constant -1028477387 : i32
    %94 = vector.broadcast %c-1028477387_i32_26 : i32 to vector<8x128xi32>
    %95 = arith.muli %93, %94 : vector<8x128xi32>
    %c16_i32_27 = arith.constant 16 : i32
    %96 = vector.broadcast %c16_i32_27 : i32 to vector<8x128xi32>
    %97 = arith.shrsi %95, %96 : vector<8x128xi32>
    %c65535_i32_28 = arith.constant 65535 : i32
    %98 = vector.broadcast %c65535_i32_28 : i32 to vector<8x128xi32>
    %99 = arith.andi %97, %98 : vector<8x128xi32>
    %100 = arith.xori %95, %99 : vector<8x128xi32>
    %c8388607_i32_29 = arith.constant 8388607 : i32
    %101 = vector.broadcast %c8388607_i32_29 : i32 to vector<8x128xi32>
    %102 = arith.andi %100, %101 : vector<8x128xi32>
    %103 = arith.sitofp %102 : vector<8x128xi32> to vector<8x128xf32>
    %cst_30 = arith.constant 5.000000e-01 : f32
    %104 = vector.broadcast %cst_30 : f32 to vector<8x128xf32>
    %105 = arith.addf %103, %104 : vector<8x128xf32>
    %cst_31 = arith.constant 1.1920929E-7 : f32
    %106 = vector.broadcast %cst_31 : f32 to vector<8x128xf32>
    %107 = arith.mulf %105, %106 : vector<8x128xf32>
    %108 = math.log %107 : vector<8x128xf32>
    %cst_32 = arith.constant 0.000000e+00 : f32
    %109 = vector.broadcast %cst_32 : f32 to vector<8x128xf32>
    %110 = arith.subf %109, %108 : vector<8x128xf32>
    %111 = arith.mulf %110, %110 : vector<8x128xf32>
    %cst_33 = arith.constant 1.000000e+00 : f32
    %112 = vector.broadcast %cst_33 : f32 to vector<8x128xf32>
    %113 = arith.divf %112, %111 : vector<8x128xf32>
    %114 = arith.mulf %7, %113 : vector<8x128xf32>
    %cst_34 = arith.constant dense<0.000000e+00> : vector<8xf32>
    %115 = vector.multi_reduction <add>, %114, %cst_34 [1] : vector<8x128xf32> to vector<8xf32>
    %116 = vector.shape_cast %115 : vector<8xf32> to vector<8x1xf32>
    %cst_35 = arith.constant 1.000000e+00 : f32
    %117 = vector.broadcast %cst_35 : f32 to vector<8x1xf32>
    %118 = arith.divf %117, %116 : vector<8x1xf32>
    %119 = vector.broadcast %118 : vector<8x1xf32> to vector<8x128xf32>
    %120 = arith.mulf %114, %119 : vector<8x128xf32>
    %121 = arith.maximumf %75, %120 : vector<8x128xf32>
    %c4_i32_36 = arith.constant 4 : i32
    %122 = vector.broadcast %c4_i32_36 : i32 to vector<8x128xi32>
    %123 = arith.muli %15, %122 : vector<8x128xi32>
    %c2_i32 = arith.constant 2 : i32
    %124 = vector.broadcast %c2_i32 : i32 to vector<8x128xi32>
    %125 = arith.addi %123, %124 : vector<8x128xi32>
    %126 = vector.broadcast %28 : i32 to vector<8x128xi32>
    %127 = arith.xori %125, %126 : vector<8x128xi32>
    %c16_i32_37 = arith.constant 16 : i32
    %128 = vector.broadcast %c16_i32_37 : i32 to vector<8x128xi32>
    %129 = arith.shrsi %127, %128 : vector<8x128xi32>
    %c65535_i32_38 = arith.constant 65535 : i32
    %130 = vector.broadcast %c65535_i32_38 : i32 to vector<8x128xi32>
    %131 = arith.andi %129, %130 : vector<8x128xi32>
    %132 = arith.xori %127, %131 : vector<8x128xi32>
    %c-2048144789_i32_39 = arith.constant -2048144789 : i32
    %133 = vector.broadcast %c-2048144789_i32_39 : i32 to vector<8x128xi32>
    %134 = arith.muli %132, %133 : vector<8x128xi32>
    %c13_i32_40 = arith.constant 13 : i32
    %135 = vector.broadcast %c13_i32_40 : i32 to vector<8x128xi32>
    %136 = arith.shrsi %134, %135 : vector<8x128xi32>
    %c524287_i32_41 = arith.constant 524287 : i32
    %137 = vector.broadcast %c524287_i32_41 : i32 to vector<8x128xi32>
    %138 = arith.andi %136, %137 : vector<8x128xi32>
    %139 = arith.xori %134, %138 : vector<8x128xi32>
    %c-1028477387_i32_42 = arith.constant -1028477387 : i32
    %140 = vector.broadcast %c-1028477387_i32_42 : i32 to vector<8x128xi32>
    %141 = arith.muli %139, %140 : vector<8x128xi32>
    %c16_i32_43 = arith.constant 16 : i32
    %142 = vector.broadcast %c16_i32_43 : i32 to vector<8x128xi32>
    %143 = arith.shrsi %141, %142 : vector<8x128xi32>
    %c65535_i32_44 = arith.constant 65535 : i32
    %144 = vector.broadcast %c65535_i32_44 : i32 to vector<8x128xi32>
    %145 = arith.andi %143, %144 : vector<8x128xi32>
    %146 = arith.xori %141, %145 : vector<8x128xi32>
    %c8388607_i32_45 = arith.constant 8388607 : i32
    %147 = vector.broadcast %c8388607_i32_45 : i32 to vector<8x128xi32>
    %148 = arith.andi %146, %147 : vector<8x128xi32>
    %149 = arith.sitofp %148 : vector<8x128xi32> to vector<8x128xf32>
    %cst_46 = arith.constant 5.000000e-01 : f32
    %150 = vector.broadcast %cst_46 : f32 to vector<8x128xf32>
    %151 = arith.addf %149, %150 : vector<8x128xf32>
    %cst_47 = arith.constant 1.1920929E-7 : f32
    %152 = vector.broadcast %cst_47 : f32 to vector<8x128xf32>
    %153 = arith.mulf %151, %152 : vector<8x128xf32>
    %154 = math.log %153 : vector<8x128xf32>
    %cst_48 = arith.constant 0.000000e+00 : f32
    %155 = vector.broadcast %cst_48 : f32 to vector<8x128xf32>
    %156 = arith.subf %155, %154 : vector<8x128xf32>
    %157 = arith.mulf %156, %156 : vector<8x128xf32>
    %cst_49 = arith.constant 1.000000e+00 : f32
    %158 = vector.broadcast %cst_49 : f32 to vector<8x128xf32>
    %159 = arith.divf %158, %157 : vector<8x128xf32>
    %160 = arith.mulf %7, %159 : vector<8x128xf32>
    %cst_50 = arith.constant dense<0.000000e+00> : vector<8xf32>
    %161 = vector.multi_reduction <add>, %160, %cst_50 [1] : vector<8x128xf32> to vector<8xf32>
    %162 = vector.shape_cast %161 : vector<8xf32> to vector<8x1xf32>
    %cst_51 = arith.constant 1.000000e+00 : f32
    %163 = vector.broadcast %cst_51 : f32 to vector<8x1xf32>
    %164 = arith.divf %163, %162 : vector<8x1xf32>
    %165 = vector.broadcast %164 : vector<8x1xf32> to vector<8x128xf32>
    %166 = arith.mulf %160, %165 : vector<8x128xf32>
    %167 = arith.maximumf %121, %166 : vector<8x128xf32>
    %c4_i32_52 = arith.constant 4 : i32
    %168 = vector.broadcast %c4_i32_52 : i32 to vector<8x128xi32>
    %169 = arith.muli %15, %168 : vector<8x128xi32>
    %c3_i32 = arith.constant 3 : i32
    %170 = vector.broadcast %c3_i32 : i32 to vector<8x128xi32>
    %171 = arith.addi %169, %170 : vector<8x128xi32>
    %172 = vector.broadcast %28 : i32 to vector<8x128xi32>
    %173 = arith.xori %171, %172 : vector<8x128xi32>
    %c16_i32_53 = arith.constant 16 : i32
    %174 = vector.broadcast %c16_i32_53 : i32 to vector<8x128xi32>
    %175 = arith.shrsi %173, %174 : vector<8x128xi32>
    %c65535_i32_54 = arith.constant 65535 : i32
    %176 = vector.broadcast %c65535_i32_54 : i32 to vector<8x128xi32>
    %177 = arith.andi %175, %176 : vector<8x128xi32>
    %178 = arith.xori %173, %177 : vector<8x128xi32>
    %c-2048144789_i32_55 = arith.constant -2048144789 : i32
    %179 = vector.broadcast %c-2048144789_i32_55 : i32 to vector<8x128xi32>
    %180 = arith.muli %178, %179 : vector<8x128xi32>
    %c13_i32_56 = arith.constant 13 : i32
    %181 = vector.broadcast %c13_i32_56 : i32 to vector<8x128xi32>
    %182 = arith.shrsi %180, %181 : vector<8x128xi32>
    %c524287_i32_57 = arith.constant 524287 : i32
    %183 = vector.broadcast %c524287_i32_57 : i32 to vector<8x128xi32>
    %184 = arith.andi %182, %183 : vector<8x128xi32>
    %185 = arith.xori %180, %184 : vector<8x128xi32>
    %c-1028477387_i32_58 = arith.constant -1028477387 : i32
    %186 = vector.broadcast %c-1028477387_i32_58 : i32 to vector<8x128xi32>
    %187 = arith.muli %185, %186 : vector<8x128xi32>
    %c16_i32_59 = arith.constant 16 : i32
    %188 = vector.broadcast %c16_i32_59 : i32 to vector<8x128xi32>
    %189 = arith.shrsi %187, %188 : vector<8x128xi32>
    %c65535_i32_60 = arith.constant 65535 : i32
    %190 = vector.broadcast %c65535_i32_60 : i32 to vector<8x128xi32>
    %191 = arith.andi %189, %190 : vector<8x128xi32>
    %192 = arith.xori %187, %191 : vector<8x128xi32>
    %c8388607_i32_61 = arith.constant 8388607 : i32
    %193 = vector.broadcast %c8388607_i32_61 : i32 to vector<8x128xi32>
    %194 = arith.andi %192, %193 : vector<8x128xi32>
    %195 = arith.sitofp %194 : vector<8x128xi32> to vector<8x128xf32>
    %cst_62 = arith.constant 5.000000e-01 : f32
    %196 = vector.broadcast %cst_62 : f32 to vector<8x128xf32>
    %197 = arith.addf %195, %196 : vector<8x128xf32>
    %cst_63 = arith.constant 1.1920929E-7 : f32
    %198 = vector.broadcast %cst_63 : f32 to vector<8x128xf32>
    %199 = arith.mulf %197, %198 : vector<8x128xf32>
    %200 = math.log %199 : vector<8x128xf32>
    %cst_64 = arith.constant 0.000000e+00 : f32
    %201 = vector.broadcast %cst_64 : f32 to vector<8x128xf32>
    %202 = arith.subf %201, %200 : vector<8x128xf32>
    %203 = arith.mulf %202, %202 : vector<8x128xf32>
    %cst_65 = arith.constant 1.000000e+00 : f32
    %204 = vector.broadcast %cst_65 : f32 to vector<8x128xf32>
    %205 = arith.divf %204, %203 : vector<8x128xf32>
    %206 = arith.mulf %7, %205 : vector<8x128xf32>
    %cst_66 = arith.constant dense<0.000000e+00> : vector<8xf32>
    %207 = vector.multi_reduction <add>, %206, %cst_66 [1] : vector<8x128xf32> to vector<8xf32>
    %208 = vector.shape_cast %207 : vector<8xf32> to vector<8x1xf32>
    %cst_67 = arith.constant 1.000000e+00 : f32
    %209 = vector.broadcast %cst_67 : f32 to vector<8x1xf32>
    %210 = arith.divf %209, %208 : vector<8x1xf32>
    %211 = vector.broadcast %210 : vector<8x1xf32> to vector<8x128xf32>
    %212 = arith.mulf %206, %211 : vector<8x128xf32>
    %213 = arith.maximumf %167, %212 : vector<8x128xf32>
    %c0_68 = arith.constant 0 : index
    %c0_69 = arith.constant 0 : index
    %214 = vector.load %arg3[%c0_68, %c0_69] : memref<8x128xf32, #tpu.memory_space<vmem>>, vector<8x128xf32>
    tpu.vector_store %arg3[%c0_68, %c0_69], %213 {strides = array<i32>} : memref<8x128xf32, #tpu.memory_space<vmem>>, vector<8x128xf32>,
    return
  }
  func.func @transform_0(%arg0: i32, %arg1: memref<1xi32, #tpu.memory_space<smem>>) -> (i32, i32) {
    %c0_i32 = arith.constant 0 : i32
    %c0_i32_0 = arith.constant 0 : i32
    return %arg0, %c0_i32 : i32, i32
  }
  func.func @transform_1(%arg0: i32, %arg1: memref<1xi32, #tpu.memory_space<smem>>) -> (i32, i32) {
    %c0_i32 = arith.constant 0 : i32
    %c0_i32_0 = arith.constant 0 : i32
    return %arg0, %c0_i32 : i32, i32
  }
}

</mosaic_0001>

<llo_original>
// kernel: tpu_custom_call.1
$region0: #{tpu_custom_call.1}
  #allocation0 [shape = 'u32[]', space=smem, size = 0x4, offset = 0x4, fixed_abs, tag = 'smem constant byte address 0x4 - core index']
  #allocation1 [shape = 'u32[144,128]{1,0:T(1,128)}', space=vmem, size = 0x12000, scoped, tag = 'internal scratch']
  #allocation2 [shape = 's32[1]{0}', space=sflag, size = 0x4, scoped, tag = 'scoped memory for tpu_custom_call.1']
  #allocation3 [shape = 's32[1]{0:T(128)S(6)}', space=smem, size = 0x200, scoped, tag = 'prefetched SMEM operand 0']
  %s0 = inlined_call_operand.<no memory space> [shape: s32[1], index: 0, kind: input, shape index: {}]
  %s1 = inlined_call_operand.hbm [shape: f32[8,128], index: 1, kind: input, shape index: {}]
  %s2 = inlined_call_operand.hbm [shape: f32[8,128], index: 2, kind: output, shape index: {}]
  %s3 = sld [smem:[#allocation0]]
  $region18: #{tpu_custom_call.1} parent=0
    _
  %s5 = ssub.s32 1, %s3
  %s6 = scalar_select 0, %s5, %s3
  %7 = sst [smem:[#allocation3]] %s0
  $region1: #{tpu_custom_call.1} parent=0
    #allocation4 [shape = 'u8[4096]{0}', space=vmem, size = 0x1000, scoped, tag = 'input window, operand 1, single buffered']
    #allocation5 [shape = 's32[1]{0}', space=sflag, size = 0x4, scoped, tag = 'scoped memory for tpu_custom_call.1']
    #allocation6 [shape = 's32[1]{0}', space=sflag, size = 0x4, scoped, tag = 'scoped memory for tpu_custom_call.1']
    #allocation7 [shape = 'u8[4096]{0}', space=vmem, size = 0x1000, scoped, tag = 'output window, operand 0, single buffered']
    %8 = vsyncpa [#allocation5], 0
    %9 = vsyncpa [#allocation6], 0
    // Predicated region
    $region2: #{tpu_custom_call.1} parent=1 // pred_check
      _
    $region3: #{tpu_custom_call.1} parent=1 // pred_check_branch
      %11 = sbr.rel (0) target = $region5
    $region4: #{tpu_custom_call.1} parent=1 // pred_region
      %s13 = ssub.s32 128, 128
      %14 = vsyncadd [#allocation5], %s13
      %s16 = sshll.u32 [#allocation4], 4
      %s17 = int_to_ptr.vmem [resolvable:$true] %s16
      %19 = dma.hbm_to_vmem [thread:$0]  %s1, 128, %s17, [#allocation5]
    $region5: #{tpu_custom_call.1} parent=1 // pred_fallthru
      _
    // Predicated region
    $region6: #{tpu_custom_call.1} parent=1 // pred_check
      _
    $region7: #{tpu_custom_call.1} parent=1 // pred_check_branch
      %21 = sbr.rel (0) target = $region9
    $region8: #{tpu_custom_call.1} parent=1 // pred_region
      %22 = dma.done [#allocation5], 128
    $region9: #{tpu_custom_call.1} parent=1 // pred_fallthru
      _
    %v23 = vld [vmem:[#allocation4] sm:$0xff]
    %24 = vmax.xlane.f32.xlu0 %v23
    %v25 = vpop.xlane.xlu0 %24
    %v26 = vsub.f32 %v23, %v25
    %v27 = vmul.f32 %v26, 2.0
    %v28 = vmul.f32 %v27, 1.442695
    %v29 = vpow.pop %v28
    %v30 = vlaneseq
    %v31 = vand.u32 %v30, 127
    %v32 = vlaneseq
    %v33 = vshrl.u32 %v32, 7
    %s34 = smul.u32 0, 8
    %v35 = vstv %s34
    %v36 = vadd.s32 %v33, %v35
    %v37 = vmul.u32 %v36, 128
    %v38 = vadd.s32 %v37, %v31
    %s39 = sld [smem:[#allocation3]]
    %s40 = sxor.u32 %s39, 2654435769
    %s41 = sshra.s32 %s40, 16
    %s42 = sand.u32 %s41, 65535
    %s43 = sxor.u32 %s40, %s42
    %s44 = smul.u32 %s43, 2246822507
    %s45 = sshra.s32 %s44, 13
    %s46 = sand.u32 %s45, 524287
    %s47 = sxor.u32 %s44, %s46
    %s48 = smul.u32 %s47, 3266489909
    %s49 = sshra.s32 %s48, 16
    %s50 = sand.u32 %s49, 65535
    %s51 = sxor.u32 %s48, %s50
    %v52 = vmul.u32 %v38, 4
    %v53 = vstv %s51
    %v54 = vxor.u32 %v52, %v53
    %v55 = vshra.s32 %v54, 16
    %v56 = vand.u32 %v55, 65535
    %v57 = vxor.u32 %v54, %v56
    %v58 = vmul.u32 %v57, 2246822507
    %v59 = vshra.s32 %v58, 13
    %v60 = vand.u32 %v59, 524287
    %v61 = vxor.u32 %v58, %v60
    %v62 = vmul.u32 %v61, 3266489909
    %v63 = vshra.s32 %v62, 16
    %v64 = vand.u32 %v63, 65535
    %v65 = vxor.u32 %v62, %v64
    %v66 = vand.u32 %v65, 8388607
    %v67 = vcvt.s32.f32 %v66
    %v68 = vadd.f32 %v67, 0.5
    %v69 = vmul.f32 %v68, 1.1920929e-07
    %v70 = vlog2.pop %v69
    %v71 = vmul.f32 %v70, 0.6931472
    %v72 = vsub.f32 0.0, %v71
    %v73 = vmul.f32 %v72, %v72
    %v74 = vrcp.pop %v73
    %v75 = vmul.f32 1.0, %v74
    %v76 = vmul.f32 %v29, %v75
    %77 = vadd.xlane.f32.xlu0 %v76
    %v78 = vpop.xlane.xlu0 %77
    %v79 = vrcp.pop %v78
    %v80 = vmul.f32 1.0, %v79
    %v81 = vmul.f32 %v76, %v80
    %v82 = vmax.f32 %v81, 0.0
    %v83 = vadd.s32 %v52, 1
    %v84 = vxor.u32 %v83, %v53
    %v85 = vshra.s32 %v84, 16
    %v86 = vand.u32 %v85, 65535
    %v87 = vxor.u32 %v84, %v86
    %v88 = vmul.u32 %v87, 2246822507
    %v89 = vshra.s32 %v88, 13
    %v90 = vand.u32 %v89, 524287
    %v91 = vxor.u32 %v88, %v90
    %v92 = vmul.u32 %v91, 3266489909
    %v93 = vshra.s32 %v92, 16
    %v94 = vand.u32 %v93, 65535
    %v95 = vxor.u32 %v92, %v94
    %v96 = vand.u32 %v95, 8388607
    %v97 = vcvt.s32.f32 %v96
    %v98 = vadd.f32 %v97, 0.5
    %v99 = vmul.f32 %v98, 1.1920929e-07
    %v100 = vlog2.pop %v99
    %v101 = vmul.f32 %v100, 0.6931472
    %v102 = vsub.f32 0.0, %v101
    %v103 = vmul.f32 %v102, %v102
    %v104 = vrcp.pop %v103
    %v105 = vmul.f32 1.0, %v104
    %v106 = vmul.f32 %v29, %v105
    %107 = vadd.xlane.f32.xlu0 %v106
    %v108 = vpop.xlane.xlu0 %107
    %v109 = vrcp.pop %v108
    %v110 = vmul.f32 1.0, %v109
    %v111 = vmul.f32 %v106, %v110
    %v112 = vmax.f32 %v82, %v111
    %v113 = vadd.s32 %v52, 2
    %v114 = vxor.u32 %v113, %v53
    %v115 = vshra.s32 %v114, 16
    %v116 = vand.u32 %v115, 65535
    %v117 = vxor.u32 %v114, %v116
    %v118 = vmul.u32 %v117, 2246822507
    %v119 = vshra.s32 %v118, 13
    %v120 = vand.u32 %v119, 524287
    %v121 = vxor.u32 %v118, %v120
    %v122 = vmul.u32 %v121, 3266489909
    %v123 = vshra.s32 %v122, 16
    %v124 = vand.u32 %v123, 65535
    %v125 = vxor.u32 %v122, %v124
    %v126 = vand.u32 %v125, 8388607
    %v127 = vcvt.s32.f32 %v126
    %v128 = vadd.f32 %v127, 0.5
    %v129 = vmul.f32 %v128, 1.1920929e-07
    %v130 = vlog2.pop %v129
    %v131 = vmul.f32 %v130, 0.6931472
    %v132 = vsub.f32 0.0, %v131
    %v133 = vmul.f32 %v132, %v132
    %v134 = vrcp.pop %v133
    %v135 = vmul.f32 1.0, %v134
    %v136 = vmul.f32 %v29, %v135
    %137 = vadd.xlane.f32.xlu0 %v136
    %v138 = vpop.xlane.xlu0 %137
    %v139 = vrcp.pop %v138
    %v140 = vmul.f32 1.0, %v139
    %v141 = vmul.f32 %v136, %v140
    %v142 = vmax.f32 %v112, %v141
    %v143 = vadd.s32 %v52, 3
    %v144 = vxor.u32 %v143, %v53
    %v145 = vshra.s32 %v144, 16
    %v146 = vand.u32 %v145, 65535
    %v147 = vxor.u32 %v144, %v146
    %v148 = vmul.u32 %v147, 2246822507
    %v149 = vshra.s32 %v148, 13
    %v150 = vand.u32 %v149, 524287
    %v151 = vxor.u32 %v148, %v150
    %v152 = vmul.u32 %v151, 3266489909
    %v153 = vshra.s32 %v152, 16
    %v154 = vand.u32 %v153, 65535
    %v155 = vxor.u32 %v152, %v154
    %v156 = vand.u32 %v155, 8388607
    %v157 = vcvt.s32.f32 %v156
    %v158 = vadd.f32 %v157, 0.5
    %v159 = vmul.f32 %v158, 1.1920929e-07
    %v160 = vlog2.pop %v159
    %v161 = vmul.f32 %v160, 0.6931472
    %v162 = vsub.f32 0.0, %v161
    %v163 = vmul.f32 %v162, %v162
    %v164 = vrcp.pop %v163
    %v165 = vmul.f32 1.0, %v164
    %v166 = vmul.f32 %v29, %v165
    %167 = vadd.xlane.f32.xlu0 %v166
    %v168 = vpop.xlane.xlu0 %167
    %v169 = vrcp.pop %v168
    %v170 = vmul.f32 1.0, %v169
    %v171 = vmul.f32 %v166, %v170
    %v172 = vmax.f32 %v142, %v171
    %173 = vst [vmem:[#allocation7] sm:$0xff] %v172
    // Predicated region
    $region10: #{tpu_custom_call.1} parent=1 // pred_check
      _
    $region11: #{tpu_custom_call.1} parent=1 // pred_check_branch
      %175 = sbr.rel (0) target = $region13
    $region12: #{tpu_custom_call.1} parent=1 // pred_region
      %s177 = ssub.s32 128, 128
      %178 = vsyncadd [#allocation6], %s177
      %s180 = sshll.u32 [#allocation7], 4
      %s181 = int_to_ptr.vmem [resolvable:$true] %s180
      %183 = dma.vmem_to_hbm [thread:$0]  %s181, 128, %s2, [#allocation6]
    $region13: #{tpu_custom_call.1} parent=1 // pred_fallthru
      _
    // Predicated region
    $region14: #{tpu_custom_call.1} parent=1 // pred_check
      _
    $region15: #{tpu_custom_call.1} parent=1 // pred_check_branch
      %185 = sbr.rel (0) target = $region17
    $region16: #{tpu_custom_call.1} parent=1 // pred_region
      %186 = dma.done [#allocation6], 128
    $region17: #{tpu_custom_call.1} parent=1 // pred_fallthru
      _
    %187 = vsyncpa [#allocation5], 1
    %188 = vsyncpa [#allocation6], 1

</llo_original>
